<compile_context>
chip_gen: v5e
topology: v5e:2x2
jax: 0.10.0
libtpu: 0.0.40
codegen_flags: <defaults>
</compile_context>

<pallas_src>
import functools

import jax
import jax.numpy as jnp
from jax.experimental import pallas as pl
from jax.experimental.pallas import tpu as pltpu


def _round_up(x, m):
    return ((x + m - 1) // m) * m


def _weighted_ce_kernel(logits_ref, gt_ref, w_ref, out_ref, *, hw, tile, ragged):
    """One (image i, pixel-tile j) step of class-weighted cross-entropy.

    logits_ref: (1, C, T)     native float dtype -- logits of image i, tile j
    gt_ref:     (1, 1, T)     integer            -- target class per pixel
    w_ref:      (C, 1)        float32            -- per-class weights
    out_ref:    (1, 1, 1, 128) float32           -- per-(i, j) partials
                                                    lane 0 = sum(w * nll), lane 1 = sum(w)
    """
    logits = logits_ref[0].astype(jnp.float32)            # (C, T)
    gt = gt_ref[0].astype(jnp.int32)                       # (1, T)
    w = w_ref[...].astype(jnp.float32)                     # (C, 1)

    # One-hot target mask, shared by both masked sublane reductions.
    cls_ids = jax.lax.broadcasted_iota(jnp.int32, logits.shape, 0)   # (C, T)
    mask = cls_ids == gt                                              # (C, T)

    # Numerically stable log-sum-exp over the class (sublane) axis.
    m = jnp.max(logits, axis=0, keepdims=True)                        # (1, T)
    lse = m + jnp.log(jnp.sum(jnp.exp(logits - m), axis=0, keepdims=True))

    tgt_logit = jnp.sum(jnp.where(mask, logits, 0.0), axis=0, keepdims=True)
    pix_w = jnp.sum(jnp.where(mask, w, 0.0), axis=0, keepdims=True)   # (1, T)
    # Out-of-range / ignored labels => mask all False => pix_w == 0.
    nll = lse - tgt_logit                                              # (1, T)

    if ragged:
        # Edge block may read garbage past hw: force those lanes to contribute
        # exactly 0 to both numerator and denominator (and never NaN/Inf).
        j = pl.program_id(1)
        lane = jax.lax.broadcasted_iota(jnp.int32, pix_w.shape, 1)
        valid = (j * tile + lane) < hw
        pix_w = jnp.where(valid, pix_w, 0.0)
        nll = jnp.where(valid, nll, 0.0)

    num = jnp.sum(nll * pix_w)   # scalar
    den = jnp.sum(pix_w)         # scalar

    out_lane = jax.lax.broadcasted_iota(jnp.int32, out_ref.shape, out_ref.ndim - 1)
    out_ref[...] = jnp.where(out_lane == 0, num,
                             jnp.where(out_lane == 1, den, 0.0)).astype(jnp.float32)


def weighted_ce_loss(pred_nchw, gt_n1hw, class_weight, criterion_weight,
                     *, vmem_budget_bytes=16 << 20):
    """Class-weighted CE with 'mean' reduction (PyTorch semantics).

    pred_nchw: (N, C, H, W) float (f32 or bf16); gt_n1hw: (N, 1, H, W) int.
    """
    n, c, h, w = pred_nchw.shape
    hw = h * w

    # Free, contiguous reshapes -- no transpose / pad / dtype copy in HBM.
    logits = pred_nchw.reshape(n, c, hw)
    gt = gt_n1hw.reshape(n, 1, hw)
    if gt.dtype.itemsize > 4 or not jnp.issubdtype(gt.dtype, jnp.integer):
        gt = gt.astype(jnp.int32)   # only widen when required; narrow ints pass through

    itemsize = jnp.dtype(logits.dtype).itemsize
    gt_itemsize = jnp.dtype(gt.dtype).itemsize
    c_pad = _round_up(c, 8)

    # Per-lane VMEM cost of one pipeline stage (double-buffered):
    #   logits block: c_pad sublanes * itemsize per lane;
    #   label block: 1 logical sublane but padded to a full (8,128) VMEM tile.
    lane_bytes = c_pad * itemsize + 8 * gt_itemsize
    tile = (vmem_budget_bytes // (2 * lane_bytes)) // 128 * 128
    tile = int(max(128, min(tile, _round_up(hw, 128))))
    grid_j = (hw + tile - 1) // tile
    ragged = (hw % tile) != 0

    w_c1 = jnp.asarray(class_weight, dtype=jnp.float32).reshape(c, 1)

    logits_block = c_pad * tile * itemsize
    gt_block = 8 * tile * gt_itemsize
    vmem_limit = int(2 * (logits_block + gt_block) + (8 << 20))   # + headroom

    kernel = functools.partial(_weighted_ce_kernel, hw=hw, tile=tile, ragged=ragged)

    partials = pl.pallas_call(
        kernel,
        out_shape=jax.ShapeDtypeStruct((n, grid_j, 1, 128), jnp.float32),
        grid_spec=pltpu.PrefetchScalarGridSpec(
            num_scalar_prefetch=0,
            grid=(n, grid_j),
            in_specs=[
                pl.BlockSpec((1, c, tile), lambda i, j: (i, 0, j)),   # logits
                pl.BlockSpec((1, 1, tile), lambda i, j: (i, 0, j)),   # labels
                pl.BlockSpec((c, 1), lambda i, j: (0, 0)),            # class weights
            ],
            out_specs=pl.BlockSpec((1, 1, 1, 128), lambda i, j: (i, j, 0, 0)),
        ),
        compiler_params=pltpu.CompilerParams(
            dimension_semantics=("parallel", "parallel"),
            vmem_limit_bytes=vmem_limit),
    )(logits, gt, w_c1)

    num = jnp.sum(partials[..., 0])
    den = jnp.sum(partials[..., 1])
    # NOTE: PyTorch gives NaN (0/0) when every label is ignored; we return 0.0.
    loss = jnp.where(den > 0, num / den, jnp.float32(0.0))
    return jnp.float32(criterion_weight) * loss


class GetCriterion:
    """JAX/Pallas port of `get_criterion` (only the 'ce' criterion)."""

    def __init__(self, criterions, class_weight):
        self.class_weight = jnp.asarray(class_weight, dtype=jnp.float32)
        self.criterion_collection = list(criterions)  # [(name, weight), ...]

    def __call__(self, pred, gt):
        output = pred[0] if isinstance(pred, (tuple, list)) else pred
        final_loss = jnp.float32(0.0)
        for name, weight in self.criterion_collection:
            if name == 'ce':
                final_loss = final_loss + weighted_ce_loss(
                    output, gt, self.class_weight, weight)
            else:
                # TODO(synk): external contrastive losses (bcl, decoder_bcl_rf,
                # multi_layer_cl) are undefined in the spec and not kernelized.
                raise NotImplementedError(
                    f'loss {name} not implemented in Pallas port')
        return final_loss


def _reference_loss(pred, gt, class_weight, criterion_weight):
    """Pure-JAX reference: weighted CE, mean reduction, ignore labels < 0 / >= C."""
    n, c, h, w = pred.shape
    logits = jnp.transpose(pred, (0, 2, 3, 1)).reshape(-1, c).astype(jnp.float32)
    labels = gt.reshape(-1).astype(jnp.int32)
    valid = (labels >= 0) & (labels < c)
    safe = jnp.where(valid, labels, 0)
    logp = jax.nn.log_softmax(logits, axis=-1)
    nll = -jnp.take_along_axis(logp, safe[:, None], axis=-1)[:, 0]
    wpix = jnp.where(valid, jnp.asarray(class_weight, jnp.float32)[safe], 0.0)
    return criterion_weight * jnp.sum(nll * wpix) / jnp.sum(wpix)


if __name__ == "__main__":
    key = jax.random.PRNGKey(0)
    k1, k2, k3, k4 = jax.random.split(key, 4)

    # Case 1: lane-aligned spatial extent (H*W % 128 == 0), all labels valid.
    N, C, H, W = 2, 4, 16, 16
    pred = jax.random.normal(k1, (N, C, H, W), dtype=jnp.float32)
    gt = jax.random.randint(k2, (N, 1, H, W), 0, C, dtype=jnp.int32)
    class_weight = jnp.array([1.0, 2.0, 0.5, 1.5], dtype=jnp.float32)

    criterion = GetCriterion(criterions=[('ce', 1.0)], class_weight=class_weight)
    loss = jax.block_until_ready(criterion(pred, gt))
    ref = _reference_loss(pred, gt, class_weight, 1.0)
    assert jnp.allclose(loss, ref, rtol=1e-5, atol=1e-5), (loss, ref)

    # Case 2: ragged pixel tile (H*W not a multiple of 128), C not a multiple
    # of 8, ignored (-1) labels, non-unit criterion weight.
    N2, C2, H2, W2 = 1, 5, 10, 12
    pred2 = jax.random.normal(k3, (N2, C2, H2, W2), dtype=jnp.float32)
    gt2 = jax.random.randint(k4, (N2, 1, H2, W2), -1, C2, dtype=jnp.int32)
    cw2 = jnp.arange(1.0, C2 + 1.0, dtype=jnp.float32)
    loss2 = jax.block_until_ready(weighted_ce_loss(pred2, gt2, cw2, 0.7))
    ref2 = _reference_loss(pred2, gt2, cw2, 0.7)
    assert jnp.allclose(loss2, ref2, rtol=1e-5, atol=1e-5), (loss2, ref2)

    print("KERNEL_OK")
</pallas_src>

<mosaic_0001>
module attributes {stable_mosaic.version = 11 : i64} {
  func.func @_weighted_ce_kernel(%arg0: i32, %arg1: i32, %arg2: memref<1x4x256xf32, #tpu.memory_space<vmem>>, %arg3: memref<1x1x256xi32, #tpu.memory_space<vmem>>, %arg4: memref<4x1xf32, #tpu.memory_space<vmem>>, %arg5: memref<1x1x1x128xf32, #tpu.memory_space<vmem>>) attributes {dimension_semantics = [#tpu.dimension_semantics<parallel>, #tpu.dimension_semantics<parallel>], iteration_bounds = array<i64: 2, 1>, scalar_prefetch = 0 : i64, scratch_operands = 0 : i64, tpu.core_type = #tpu.core_type<tc>, window_params = [{transform_indices = @transform_0, window_bounds = array<i64: 1, 4, 256>}, {transform_indices = @transform_1, window_bounds = array<i64: 1, 1, 256>}, {pipeline_mode = #tpu.pipeline_mode<synchronous>, transform_indices = @transform_2, window_bounds = array<i64: 4, 1>}, {transform_indices = @transform_3, window_bounds = array<i64: 1, 1, 1, 128>}]} {
    %c0 = arith.constant 0 : index
    %c0_0 = arith.constant 0 : index
    %c0_1 = arith.constant 0 : index
    %0 = vector.load %arg2[%c0, %c0_0, %c0_1] : memref<1x4x256xf32, #tpu.memory_space<vmem>>, vector<1x4x256xf32>
    %1 = vector.shape_cast %0 : vector<1x4x256xf32> to vector<4x256xf32>
    %c0_2 = arith.constant 0 : index
    %c0_3 = arith.constant 0 : index
    %c0_4 = arith.constant 0 : index
    %2 = vector.load %arg3[%c0_2, %c0_3, %c0_4] : memref<1x1x256xi32, #tpu.memory_space<vmem>>, vector<1x1x256xi32>
    %3 = vector.shape_cast %2 : vector<1x1x256xi32> to vector<1x256xi32>
    %c0_5 = arith.constant 0 : index
    %c0_6 = arith.constant 0 : index
    %4 = vector.load %arg4[%c0_5, %c0_6] : memref<4x1xf32, #tpu.memory_space<vmem>>, vector<4x1xf32>
    %5 = tpu.iota {dimensions = array<i32: 0>} : vector<4x256xi32>
    %6 = vector.broadcast %3 : vector<1x256xi32> to vector<4x256xi32>
    %7 = arith.cmpi eq, %5, %6 : vector<4x256xi32>
    %cst = arith.constant dense<0xFF800000> : vector<256xf32>
    %8 = vector.multi_reduction <maximumf>, %1, %cst [0] : vector<4x256xf32> to vector<256xf32>
    %9 = vector.shape_cast %8 : vector<256xf32> to vector<1x256xf32>
    %10 = vector.broadcast %9 : vector<1x256xf32> to vector<4x256xf32>
    %11 = arith.subf %1, %10 : vector<4x256xf32>
    %12 = math.exp %11 : vector<4x256xf32>
    %cst_7 = arith.constant dense<0.000000e+00> : vector<256xf32>
    %13 = vector.multi_reduction <add>, %12, %cst_7 [0] : vector<4x256xf32> to vector<256xf32>
    %14 = vector.shape_cast %13 : vector<256xf32> to vector<1x256xf32>
    %15 = math.log %14 : vector<1x256xf32>
    %16 = arith.addf %9, %15 : vector<1x256xf32>
    %cst_8 = arith.constant 0.000000e+00 : f32
    %17 = vector.broadcast %cst_8 : f32 to vector<4x256xf32>
    %18 = arith.select %7, %1, %17 : vector<4x256xi1>, vector<4x256xf32>
    %cst_9 = arith.constant dense<0.000000e+00> : vector<256xf32>
    %19 = vector.multi_reduction <add>, %18, %cst_9 [0] : vector<4x256xf32> to vector<256xf32>
    %20 = vector.shape_cast %19 : vector<256xf32> to vector<1x256xf32>
    %cst_10 = arith.constant 0.000000e+00 : f32
    %21 = vector.shape_cast %4 : vector<4x1xf32> to vector<4x1xf32>
    %22 = vector.broadcast %21 : vector<4x1xf32> to vector<4x256xf32>
    %23 = vector.broadcast %cst_10 : f32 to vector<4x256xf32>
    %24 = arith.select %7, %22, %23 : vector<4x256xi1>, vector<4x256xf32>
    %cst_11 = arith.constant dense<0.000000e+00> : vector<256xf32>
    %25 = vector.multi_reduction <add>, %24, %cst_11 [0] : vector<4x256xf32> to vector<256xf32>
    %26 = vector.shape_cast %25 : vector<256xf32> to vector<1x256xf32>
    %27 = arith.subf %16, %20 : vector<1x256xf32>
    %28 = arith.mulf %27, %26 : vector<1x256xf32>
    %29 = vector.shape_cast %28 : vector<1x256xf32> to vector<1x1x256xf32>
    %cst_12 = arith.constant dense<0.000000e+00> : vector<1xf32>
    %30 = vector.multi_reduction <add>, %29, %cst_12 [1, 2] : vector<1x1x256xf32> to vector<1xf32>
    %31 = vector.shape_cast %30 : vector<1xf32> to vector<1x1x1xf32>
    %32 = vector.extract %31[0, 0, 0] : f32 from vector<1x1x1xf32>
    %33 = vector.shape_cast %26 : vector<1x256xf32> to vector<1x1x256xf32>
    %cst_13 = arith.constant dense<0.000000e+00> : vector<1xf32>
    %34 = vector.multi_reduction <add>, %33, %cst_13 [1, 2] : vector<1x1x256xf32> to vector<1xf32>
    %35 = vector.shape_cast %34 : vector<1xf32> to vector<1x1x1xf32>
    %36 = vector.extract %35[0, 0, 0] : f32 from vector<1x1x1xf32>
    %37 = tpu.iota {dimensions = array<i32: 3>} : vector<1x1x1x128xi32>
    %c0_i32 = arith.constant 0 : i32
    %38 = vector.broadcast %c0_i32 : i32 to vector<1x1x1x128xi32>
    %39 = arith.cmpi eq, %37, %38 : vector<1x1x1x128xi32>
    %c1_i32 = arith.constant 1 : i32
    %40 = vector.broadcast %c1_i32 : i32 to vector<1x1x1x128xi32>
    %41 = arith.cmpi eq, %37, %40 : vector<1x1x1x128xi32>
    %cst_14 = arith.constant 0.000000e+00 : f32
    %42 = vector.broadcast %36 : f32 to vector<1x1x1x128xf32>
    %43 = vector.broadcast %cst_14 : f32 to vector<1x1x1x128xf32>
    %44 = arith.select %41, %42, %43 : vector<1x1x1x128xi1>, vector<1x1x1x128xf32>
    %45 = vector.broadcast %32 : f32 to vector<1x1x1x128xf32>
    %46 = arith.select %39, %45, %44 : vector<1x1x1x128xi1>, vector<1x1x1x128xf32>
    %c0_15 = arith.constant 0 : index
    %c0_16 = arith.constant 0 : index
    %c0_17 = arith.constant 0 : index
    %c0_18 = arith.constant 0 : index
    %47 = vector.load %arg5[%c0_15, %c0_16, %c0_17, %c0_18] : memref<1x1x1x128xf32, #tpu.memory_space<vmem>>, vector<1x1x1x128xf32>
    tpu.vector_store %arg5[%c0_15, %c0_16, %c0_17, %c0_18], %46 {strides = array<i32>} : memref<1x1x1x128xf32, #tpu.memory_space<vmem>>, vector<1x1x1x128xf32>,
    return
  }
  func.func @transform_0(%arg0: i32, %arg1: i32) -> (i32, i32, i32) {
    %c0_i32 = arith.constant 0 : i32
    %c0_i32_0 = arith.constant 0 : i32
    return %arg0, %c0_i32, %arg1 : i32, i32, i32
  }
  func.func @transform_1(%arg0: i32, %arg1: i32) -> (i32, i32, i32) {
    %c0_i32 = arith.constant 0 : i32
    %c0_i32_0 = arith.constant 0 : i32
    return %arg0, %c0_i32, %arg1 : i32, i32, i32
  }
  func.func @transform_2(%arg0: i32, %arg1: i32) -> (i32, i32) {
    %c0_i32 = arith.constant 0 : i32
    %c0_i32_0 = arith.constant 0 : i32
    %c0_i32_1 = arith.constant 0 : i32
    return %c0_i32, %c0_i32_0 : i32, i32
  }
  func.func @transform_3(%arg0: i32, %arg1: i32) -> (i32, i32, i32, i32) {
    %c0_i32 = arith.constant 0 : i32
    %c0_i32_0 = arith.constant 0 : i32
    %c0_i32_1 = arith.constant 0 : i32
    return %arg0, %arg1, %c0_i32, %c0_i32_0 : i32, i32, i32, i32
  }
}

</mosaic_0001>

<llo_original>
// kernel: tpu_custom_call.1
$region0: #{tpu_custom_call.1}
  #allocation0 [shape = 'u32[]', space=smem, size = 0x4, offset = 0x4, fixed_abs, tag = 'smem constant byte address 0x4 - core index']
  #allocation1 [shape = 'u32[72,128]{1,0:T(1,128)}', space=vmem, size = 0x9000, scoped, tag = 'internal scratch']
  %s0 = inlined_call_operand.hbm [shape: f32[2,4,256], index: 0, kind: input, shape index: {}]
  %s1 = inlined_call_operand.vmem [shape: s32[2,1,256], index: 1, kind: input, shape index: {}]
  %s2 = inlined_call_operand.vmem [shape: f32[4,1], index: 2, kind: input, shape index: {}]
  %s3 = inlined_call_operand.hbm [shape: f32[2,1,1,128], index: 3, kind: output, shape index: {}]
  %s4 = sld [smem:[#allocation0]]
  $region49: #{tpu_custom_call.1} parent=0
    _
  %s6 = ssub.s32 1, %s4
  %s7 = scalar_select 0, %s6, %s4
  $region1: #{tpu_custom_call.1} parent=0
    #allocation2 [shape = 'u8[8192]{0}', space=vmem, size = 0x2000, scoped, tag = 'input window, operand 0']
    #allocation3 [shape = 's32[2]{0}', space=sflag, size = 0x8, scoped, tag = 'scoped memory for tpu_custom_call.1']
    #allocation4 [shape = 's32[2]{0}', space=sflag, size = 0x8, scoped, tag = 'scoped memory for tpu_custom_call.1']
    #allocation5 [shape = 'u8[1024]{0}', space=vmem, size = 0x400, scoped, tag = 'output window, operand 0']
    %8 = vsyncpa [#allocation3], 0
    %s9 = scalar_lea.sflag [#allocation3], 1
    %10 = vsyncpa %s9, 0
    %11 = vsyncpa [#allocation4], 0
    %s12 = scalar_lea.sflag [#allocation4], 1
    %13 = vsyncpa %s12, 0
    loop: start=0, step=1, limit=4
    $region2: #{tpu_custom_call.1} parent=1 // loop_pre_header
      _
    $region3: #{tpu_custom_call.1} parent=1 // loop_header
      %s15 = sphi 0, %s19
      %p16 = scmp.ge.s32.totalorder %s15, 4
      %s22 = sphi 0, %s34
      %s23 = sphi 0, %s30
      %s24 = sphi 0, %s22
      %s25 = sphi 0, %s23
      %s26 = sphi 0, %s24
      %s27 = sphi 0, %s25
      %s39 = sphi 0, %s41
      %s42 = sphi 0, %s39
      %s43 = sphi 0, %s42
      %s59 = sphi 0, %s43
      %s67 = sphi 0, %s69
      %s70 = sphi 0, %s67
      %s71 = sphi 0, %s70
      %s87 = sphi 0, %s71
      %s91 = sphi 0, %s91
      %s93 = sphi 0, %s91
      %s94 = sphi 0, %s93
      %s108 = sphi 0, %s94
      %s116 = sphi 0, %s118
      %s119 = sphi 0, %s116
      %s120 = sphi 0, %s119
      %s136 = sphi 0, %s120
    $region4: #{tpu_custom_call.1} parent=1 // loop_header_branch
      %18 = sbr.rel (%p16) target = $region8
    $region5: #{tpu_custom_call.1} parent=1 // loop_body
      %s20 = ssub.s32 %s15, 1
      %s21 = ssub.s32 %s15, 2
      %s28 = sadd.s32 1, %s23
      %p29 = scmp.ge.s32.totalorder %s28, 1
      %s30 = scalar_select %p29, 0, %s28
      %s31 = sadd.s32 1, %s22
      %s32 = scalar_select %p29, %s31, %s22
      %p33 = scmp.ge.s32.totalorder %s32, 2
      %s34 = scalar_select %p33, 0, %s32
      %s35 = ssub.s32 %s22, %s34
      %s36 = ssub.s32 %s23, %s30
      %s37 = sor.u32 %s35, %s36
      %p38 = scmp.eq.s32.totalorder %s37, 0
      %s40 = sadd.s32 %s39, 1
      %s41 = scalar_select %p38, %s39, %s40
      %p44 = pneg %p38
      %p45 = scmp.eq.s32.totalorder %s15, 1
      %p46 = por %p44, %p45
      %p47 = scmp.ne.s32.totalorder %s39, %s42
      %p48 = scmp.eq.s32.totalorder %s15, 0
      %p49 = por %p47, %p48
      %p50 = scmp.ne.s32.totalorder %s39, %s42
      %p51 = scmp.eq.s32.totalorder %s20, 1
      %p52 = por %p50, %p51
      %p53 = scmp.ne.s32.totalorder %s42, %s43
      %p54 = scmp.eq.s32.totalorder %s20, 0
      %p55 = por %p53, %p54
      %p56 = scmp.ne.s32.totalorder %s42, %s43
      %p57 = scmp.eq.s32.totalorder %s21, 1
      %p58 = por %p56, %p57
      %p60 = scmp.ne.s32.totalorder %s43, %s59
      %p61 = scmp.eq.s32.totalorder %s21, 0
      %p62 = por %p60, %p61
      %s63 = ssub.s32 %s22, %s34
      %s64 = ssub.s32 %s23, %s30
      %s65 = sor.u32 %s63, %s64
      %p66 = scmp.eq.s32.totalorder %s65, 0
      %s68 = sadd.s32 %s67, 1
      %s69 = scalar_select %p66, %s67, %s68
      %p72 = pneg %p66
      %p73 = scmp.eq.s32.totalorder %s15, 1
      %p74 = por %p72, %p73
      %p75 = scmp.ne.s32.totalorder %s67, %s70
      %p76 = scmp.eq.s32.totalorder %s15, 0
      %p77 = por %p75, %p76
      %p78 = scmp.ne.s32.totalorder %s67, %s70
      %p79 = scmp.eq.s32.totalorder %s20, 1
      %p80 = por %p78, %p79
      %p81 = scmp.ne.s32.totalorder %s70, %s71
      %p82 = scmp.eq.s32.totalorder %s20, 0
      %p83 = por %p81, %p82
      %p84 = scmp.ne.s32.totalorder %s70, %s71
      %p85 = scmp.eq.s32.totalorder %s21, 1
      %p86 = por %p84, %p85
      %p88 = scmp.ne.s32.totalorder %s71, %s87
      %p89 = scmp.eq.s32.totalorder %s21, 0
      %p90 = por %p88, %p89
      %s92 = sadd.s32 %s91, 1
      %p95 = scmp.eq.s32.totalorder %s15, 1
      %p96 = scmp.ne.s32.totalorder %s91, %s93
      %p97 = scmp.eq.s32.totalorder %s15, 0
      %p98 = por %p96, %p97
      %p99 = scmp.ne.s32.totalorder %s91, %s93
      %p100 = scmp.eq.s32.totalorder %s20, 1
      %p101 = por %p99, %p100
      %p102 = scmp.ne.s32.totalorder %s93, %s94
      %p103 = scmp.eq.s32.totalorder %s20, 0
      %p104 = por %p102, %p103
      %p105 = scmp.ne.s32.totalorder %s93, %s94
      %p106 = scmp.eq.s32.totalorder %s21, 1
      %p107 = por %p105, %p106
      %p109 = scmp.ne.s32.totalorder %s94, %s108
      %p110 = scmp.eq.s32.totalorder %s21, 0
      %p111 = por %p109, %p110
      %s112 = ssub.s32 %s22, %s34
      %s113 = ssub.s32 %s23, %s30
      %s114 = sor.u32 %s112, %s113
      %p115 = scmp.eq.s32.totalorder %s114, 0
      %s117 = sadd.s32 %s116, 1
      %s118 = scalar_select %p115, %s116, %s117
      %p121 = pneg %p115
      %p122 = scmp.eq.s32.totalorder %s15, 1
      %p123 = por %p121, %p122
      %p124 = scmp.ne.s32.totalorder %s116, %s119
      %p125 = scmp.eq.s32.totalorder %s15, 0
      %p126 = por %p124, %p125
      %p127 = scmp.ne.s32.totalorder %s116, %s119
      %p128 = scmp.eq.s32.totalorder %s20, 1
      %p129 = por %p127, %p128
      %p130 = scmp.ne.s32.totalorder %s119, %s120
      %p131 = scmp.eq.s32.totalorder %s20, 0
      %p132 = por %p130, %p131
      %p133 = scmp.ne.s32.totalorder %s119, %s120
      %p134 = scmp.eq.s32.totalorder %s21, 1
      %p135 = por %p133, %p134
      %p137 = scmp.ne.s32.totalorder %s120, %s136
      %p138 = scmp.eq.s32.totalorder %s21, 0
      %p139 = por %p137, %p138
      %p140 = scmp.le.s32.totalorder 1, %s15
      %p141 = scmp.lt.s32.totalorder %s15, 3
      %p142 = pnand %p140, %p141
      %p143 = pneg %p142
      // Predicated region
      $region9: #{tpu_custom_call.1} parent=5 // pred_check
        _
      $region10: #{tpu_custom_call.1} parent=5 // pred_check_branch
        %145 = sbr.rel (%p142) target = $region12
      $region11: #{tpu_custom_call.1} parent=5 // pred_region
        %s146 = ssub.s32 %s15, 1
        // Predicated region
        $region13: #{tpu_custom_call.1} parent=11 // pred_check
          %p147 = pneg %p104
        $region14: #{tpu_custom_call.1} parent=11 // pred_check_branch
          %149 = sbr.rel (%p147) target = $region16
        $region15: #{tpu_custom_call.1} parent=11 // pred_region
          _
        $region16: #{tpu_custom_call.1} parent=11 // pred_fallthru
          _
      $region12: #{tpu_custom_call.1} parent=5 // pred_fallthru
        _
      %p150 = scmp.lt.s32.totalorder %s15, 2
      // Predicated region
      $region17: #{tpu_custom_call.1} parent=5 // pred_check
        %p151 = pneg %p150
      $region18: #{tpu_custom_call.1} parent=5 // pred_check_branch
        %153 = sbr.rel (%p151) target = $region20
      $region19: #{tpu_custom_call.1} parent=5 // pred_region
        // Predicated region
        $region21: #{tpu_custom_call.1} parent=19 // pred_check
          %p154 = pneg %p49
        $region22: #{tpu_custom_call.1} parent=19 // pred_check_branch
          %156 = sbr.rel (%p154) target = $region24
        $region23: #{tpu_custom_call.1} parent=19 // pred_region
          %s157 = sand.u32 %s39, 1
          %s158 = scalar_lea.sflag [#allocation3], %s157
          %s159 = sand.u32 %s39, 1
          %s160 = smul.addr %s159, 8
          %s161 = scalar_lea.vmem [#allocation2], %s160
          %s162 = smul.u32 2, %s23
          %164 = vsyncadd %s158, 0
          %s165 = smul.addr %s22, 2
          %s166 = sadd.s32 %s162, %s165
          %s167 = smul.addr %s166, 4
          %s168 = scalar_lea.hbm %s0, %s167
          %s170 = sshll.u32 %s168, 4
          %s171 = int_to_ptr.hbm [resolvable:$true] %s170
          %s172 = sshll.u32 %s161, 4
          %s173 = int_to_ptr.vmem [resolvable:$true] %s172
          %175 = dma.hbm_to_vmem [thread:$0]  %s171, 128, %s173, %s158
        $region24: #{tpu_custom_call.1} parent=19 // pred_fallthru
          _
        // Predicated region
        $region25: #{tpu_custom_call.1} parent=19 // pred_check
          %p176 = pneg %p77
        $region26: #{tpu_custom_call.1} parent=19 // pred_check_branch
          %178 = sbr.rel (%p176) target = $region28
        $region27: #{tpu_custom_call.1} parent=19 // pred_region
          %s179 = smul.u32 2, %s23
          %p180 = scmp.lt.s32.totalorder %s22, 1
          %s181 = scalar_select %p180, %s22, 1
          %p182 = scmp.lt.s32.totalorder %s179, 1
          %s183 = scalar_select %p182, %s179, 1
          %s184 = smul.addr %s181, 2
          %s185 = sadd.s32 %s183, %s184
          %s186 = scalar_lea.vmem %s1, %s185
          %s187 = smul.u32 2, %s23
        $region28: #{tpu_custom_call.1} parent=19 // pred_fallthru
          _
      $region20: #{tpu_custom_call.1} parent=5 // pred_fallthru
        _
      %p188 = scmp.le.s32.totalorder 1, %s15
      %p189 = scmp.lt.s32.totalorder %s15, 3
      %p190 = pnand %p188, %p189
      %p191 = pneg %p190
      // Predicated region
      $region29: #{tpu_custom_call.1} parent=5 // pred_check
        _
      $region30: #{tpu_custom_call.1} parent=5 // pred_check_branch
        %193 = sbr.rel (%p190) target = $region32
      $region31: #{tpu_custom_call.1} parent=5 // pred_region
        %s194 = ssub.s32 %s15, 1
        %s195 = sand.u32 %s42, 1
        %s196 = scalar_lea.sflag [#allocation3], %s195
        %s197 = sand.u32 %s42, 1
        %s198 = smul.addr %s197, 8
        %s199 = scalar_lea.vmem [#allocation2], %s198
        // Predicated region
        $region33: #{tpu_custom_call.1} parent=31 // pred_check
          %p200 = pneg %p55
        $region34: #{tpu_custom_call.1} parent=31 // pred_check_branch
          %202 = sbr.rel (%p200) target = $region36
        $region35: #{tpu_custom_call.1} parent=31 // pred_region
          %204 = dma.done %s196, 128
        $region36: #{tpu_custom_call.1} parent=31 // pred_fallthru
          _
        %s205 = sand.u32 %s42, 1
        %s206 = scalar_lea.sflag [#allocation3], %s205
        %s207 = sand.u32 %s42, 1
        %s208 = smul.addr %s207, 8
        %s209 = scalar_lea.vmem [#allocation2], %s208
        %p210 = pneg %p55
        %p211 = pneg %p52
        %s212 = smul.u32 2, %s25
        %p213 = scmp.lt.s32.totalorder %s24, 1
        %s214 = scalar_select %p213, %s24, 1
        %p215 = scmp.lt.s32.totalorder %s212, 1
        %s216 = scalar_select %p215, %s212, 1
        %s217 = smul.addr %s214, 2
        %s218 = sadd.s32 %s216, %s217
        %s219 = scalar_lea.vmem %s1, %s218
        %p220 = pneg %p83
        %p221 = pneg %p80
        %p222 = pneg %p104
        %p223 = pneg %p101
        %p224 = pneg %p132
        %p225 = pneg %p129
        %s226 = sand.u32 %s119, 1
        %s227 = scalar_lea.sflag [#allocation4], %s226
        %s228 = sand.u32 %s119, 1
        %s229 = scalar_lea.vmem [#allocation5], %s228
        %s230 = smul.u32 2, %s25
        %s231 = smul.u32 2, %s25
        %p232 = scmp.lt.s32.totalorder %s24, 1
        %s233 = scalar_select %p232, %s24, 1
        %p234 = scmp.lt.s32.totalorder %s231, 1
        %s235 = scalar_select %p234, %s231, 1
        %s236 = smul.addr %s233, 2
        %s237 = sadd.s32 %s235, %s236
        %s238 = scalar_lea.vmem %s1, %s237
        %s239 = smul.u32 2, %s25
        %v240 = vld [vmem:[%s199] sm:$0xff]
        %v241 = vld [vmem:[%s238] sm:$0x3]
        %v242 = vld [vmem:[%s2] sm:$0xf]
        %v243 = vlaneseq
        %v244 = vshrl.u32 %v243, 7
        %v245 = vperm.slane %v241, 0
        %v246 = vperm.slane %v241, 1
        %vm247 = vcmp.eq.s32.totalorder %v244, %v245
        %vm248 = vcmp.eq.s32.totalorder %v244, %v246
        %250 = vst [vmem:[#allocation1] ss:$2 sm:$0xff] %v240
        %v251 = vld.sshfl [vmem:[#allocation1] sm:$0xff pattern:$0x75316420]
        %v252 = vld.sshfl [vmem:[#allocation1 + $0x8] sm:$0xff pattern:$0x75316420]
        %vm255 = vcmask 1043456
        %v256 = vsel %vm255, %v251, -inf
        %v257 = vrot.slane %v256, 4
        %v258 = vmax.f32 %v256, %v257
        %v259 = vrot.slane %v258, 2
        %v260 = vmax.f32 %v258, %v259
        %v261 = vrot.slane %v260, 1
        %v262 = vmax.f32 %v260, %v261
        %v263 = vsel %vm255, %v252, -inf
        %v264 = vrot.slane %v263, 4
        %v265 = vmax.f32 %v263, %v264
        %v266 = vrot.slane %v265, 2
        %v267 = vmax.f32 %v265, %v266
        %v268 = vrot.slane %v267, 1
        %v269 = vmax.f32 %v267, %v268
        %v272 = vrot.slane %v269, 4
        %v273 = vsel %vm255, %v262, %v272
        %v275 = vsub.f32 %v240, %v273
        %v276 = vmul.f32 %v275, 1.442695
        %v277 = vpow.pop %v276
        %279 = vst [vmem:[#allocation1] ss:$2 sm:$0xff] %v277
        %v280 = vld.sshfl [vmem:[#allocation1] sm:$0xff pattern:$0x75316420]
        %v281 = vld.sshfl [vmem:[#allocation1 + $0x8] sm:$0xff pattern:$0x75316420]
        %v284 = vsel %vm255, %v280, 0.0
        %v285 = vrot.slane %v284, 4
        %v286 = vadd.f32 %v284, %v285
        %v287 = vrot.slane %v286, 2
        %v288 = vadd.f32 %v286, %v287
        %v289 = vrot.slane %v288, 1
        %v290 = vadd.f32 %v288, %v289
        %v291 = vsel %vm255, %v281, 0.0
        %v292 = vrot.slane %v291, 4
        %v293 = vadd.f32 %v291, %v292
        %v294 = vrot.slane %v293, 2
        %v295 = vadd.f32 %v293, %v294
        %v296 = vrot.slane %v295, 1
        %v297 = vadd.f32 %v295, %v296
        %v298 = vlog2.pop %v290
        %v299 = vmul.f32 %v298, 0.6931472
        %v300 = vlog2.pop %v297
        %v301 = vmul.f32 %v300, 0.6931472
        %v302 = vadd.f32 %v262, %v299
        %v303 = vadd.f32 %v269, %v301
        %304 = vst [vmem:[#allocation1] ss:$2 sm:$0xff] %v240
        %v305 = vld.sshfl [vmem:[#allocation1] sm:$0xff pattern:$0x75316420]
        %v306 = vld.sshfl [vmem:[#allocation1 + $0x8] sm:$0xff pattern:$0x75316420]
        %v309 = vsel %vm247, %v305, 0.0
        %v310 = vsel %vm248, %v306, 0.0
        %v311 = vsel %vm255, %v309, 0.0
        %v312 = vrot.slane %v311, 4
        %v313 = vadd.f32 %v311, %v312
        %v314 = vrot.slane %v313, 2
        %v315 = vadd.f32 %v313, %v314
        %v316 = vrot.slane %v315, 1
        %v317 = vadd.f32 %v315, %v316
        %v318 = vsel %vm255, %v310, 0.0
        %v319 = vrot.slane %v318, 4
        %v320 = vadd.f32 %v318, %v319
        %v321 = vrot.slane %v320, 2
        %v322 = vadd.f32 %v320, %v321
        %v323 = vrot.slane %v322, 1
        %v324 = vadd.f32 %v322, %v323
        %326 = vset.pattern.permute.xlu0 0
        %327 = vperm.xlu0 %326, %v242
        %v328 = vpop.permute.xlu0 %327
        %v330 = vsel %vm247, %v328, 0.0
        %v331 = vsel %vm248, %v328, 0.0
        %v332 = vsel %vm255, %v330, 0.0
        %v333 = vrot.slane %v332, 4
        %v334 = vadd.f32 %v332, %v333
        %v335 = vrot.slane %v334, 2
        %v336 = vadd.f32 %v334, %v335
        %v337 = vrot.slane %v336, 1
        %v338 = vadd.f32 %v336, %v337
        %v339 = vsel %vm255, %v331, 0.0
        %v340 = vrot.slane %v339, 4
        %v341 = vadd.f32 %v339, %v340
        %v342 = vrot.slane %v341, 2
        %v343 = vadd.f32 %v341, %v342
        %v344 = vrot.slane %v343, 1
        %v345 = vadd.f32 %v343, %v344
        %v346 = vsub.f32 %v302, %v317
        %v347 = vsub.f32 %v303, %v324
        %v348 = vmul.f32 %v346, %v338
        %v349 = vmul.f32 %v347, %v345
        %vm350 = vcmask 1040384
        %v351 = vsel %vm350, %v348, 0.0
        %v352 = vsel %vm350, %v349, 0.0
        %v353 = vadd.f32 %v351, %v352
        %354 = vadd.xlane.f32.xlu0 %v353
        %v355 = vpop.xlane.xlu0 %354
        %v356 = vrot.slane %v355, 4
        %v357 = vadd.f32 %v355, %v356
        %v358 = vrot.slane %v357, 2
        %v359 = vadd.f32 %v357, %v358
        %v360 = vrot.slane %v359, 1
        %v361 = vadd.f32 %v359, %v360
        %s362 = vtos %v361
        %v363 = vsel %vm350, %v338, 0.0
        %v364 = vsel %vm350, %v345, 0.0
        %v365 = vadd.f32 %v363, %v364
        %366 = vadd.xlane.f32.xlu0 %v365
        %v367 = vpop.xlane.xlu0 %366
        %v368 = vrot.slane %v367, 4
        %v369 = vadd.f32 %v367, %v368
        %v370 = vrot.slane %v369, 2
        %v371 = vadd.f32 %v369, %v370
        %v372 = vrot.slane %v371, 1
        %v373 = vadd.f32 %v371, %v372
        %s374 = vtos %v373
        %v375 = vlaneseq
        %v376 = vand.u32 %v375, 127
        %vm377 = vcmp.eq.s32.totalorder %v376, 0
        %vm378 = vcmp.eq.s32.totalorder %v376, 1
        %v379 = vstv %s374
        %v380 = vsel %vm378, %v379, 0.0
        %v381 = vstv %s362
        %v382 = vsel %vm377, %v381, %v380
        %383 = vst [vmem:[%s229] sm:$0x1] %v382
        %s384 = sand.u32 %s119, 1
        %s385 = scalar_lea.sflag [#allocation4], %s384
        %s386 = sand.u32 %s119, 1
        %s387 = scalar_lea.vmem [#allocation5], %s386
        // Predicated region
        $region37: #{tpu_custom_call.1} parent=31 // pred_check
          %p388 = pneg %p129
        $region38: #{tpu_custom_call.1} parent=31 // pred_check_branch
          %390 = sbr.rel (%p388) target = $region40
        $region39: #{tpu_custom_call.1} parent=31 // pred_region
          %392 = vsyncadd %s385, 0
          %s393 = sadd.s32 %s25, %s24
          %s394 = scalar_lea.hbm %s3, %s393
          %s396 = sshll.u32 %s387, 4
          %s397 = int_to_ptr.vmem [resolvable:$true] %s396
          %s398 = sshll.u32 %s394, 4
          %s399 = int_to_ptr.hbm [resolvable:$true] %s398
          %401 = dma.vmem_to_hbm [thread:$0]  %s397, 16, %s399, %s385
        $region40: #{tpu_custom_call.1} parent=31 // pred_fallthru
          _
      $region32: #{tpu_custom_call.1} parent=5 // pred_fallthru
        _
      %p402 = scmp.le.s32.totalorder 2, %s15
      // Predicated region
      $region41: #{tpu_custom_call.1} parent=5 // pred_check
        %p403 = pneg %p402
      $region42: #{tpu_custom_call.1} parent=5 // pred_check_branch
        %405 = sbr.rel (%p403) target = $region44
      $region43: #{tpu_custom_call.1} parent=5 // pred_region
        %s406 = ssub.s32 %s15, 2
        // Predicated region
        $region45: #{tpu_custom_call.1} parent=43 // pred_check
          %p407 = pneg %p135
        $region46: #{tpu_custom_call.1} parent=43 // pred_check_branch
          %409 = sbr.rel (%p407) target = $region48
        $region47: #{tpu_custom_call.1} parent=43 // pred_region
          %s410 = sand.u32 %s120, 1
          %s411 = scalar_lea.sflag [#allocation4], %s410
          %s412 = sand.u32 %s120, 1
          %s413 = scalar_lea.vmem [#allocation5], %s412
          %415 = dma.done %s411, 16
        $region48: #{tpu_custom_call.1} parent=43 // pred_fallthru
          _
      $region44: #{tpu_custom_call.1} parent=5 // pred_fallthru
        _
    $region6: #{tpu_custom_call.1} parent=1 // loop_footer
      %s19 = sadd.s32 1, %s15
    $region7: #{tpu_custom_call.1} parent=1 // loop_footer_branch
      %14 = sbr.rel target = $region3
    $region8: #{tpu_custom_call.1} parent=1 // loop_exit
      _
    %416 = vsyncpa [#allocation3], 1
    %s417 = scalar_lea.sflag [#allocation3], 1
    %418 = vsyncpa %s417, 1
    %419 = vsyncpa [#allocation4], 1
    %s420 = scalar_lea.sflag [#allocation4], 1
    %421 = vsyncpa %s420, 1

</llo_original>
